<compile_context>
chip_gen: v6e
topology: v6e:2x2x1
jax: 0.10.0
libtpu: 0.0.40
codegen_flags: <defaults>
</compile_context>

<pallas_src>
import jax
import jax.numpy as jnp
from jax.experimental import pallas as pl
from jax.experimental.pallas import tpu as pltpu


# ---------------------------------------------------------------------------
# Kernel
# ---------------------------------------------------------------------------
def _qnet_kernel(state_ref, action_ref, w1s_ref, w1a_ref, b1_ref,
                 w2_ref, b2_ref, w3_ref, b3_ref, o_ref):
    e = pl.program_id(0)  # which critic this grid step serves

    s = state_ref[...].astype(jnp.bfloat16)   # (tb, ni)
    a = action_ref[...].astype(jnp.bfloat16)  # (tb, na)

    # layer 1 -- concat fused away: cat(s,a) @ W1 == s @ W1[:ni] + a @ W1[ni:]
    h1 = jnp.dot(s, w1s_ref[0], preferred_element_type=jnp.float32)
    h1 = h1 + jnp.dot(a, w1a_ref[0], preferred_element_type=jnp.float32)
    h1 = jnp.maximum(h1 + b1_ref[0], 0.0)     # f32 bias + ReLU (v5e-safe VPU)

    # layer 2 -- bf16 MXU matmul, f32 accumulate
    h2 = jnp.dot(h1.astype(jnp.bfloat16), w2_ref[0],
                 preferred_element_type=jnp.float32)
    h2 = jnp.maximum(h2 + b2_ref[0], 0.0)

    # layer 3 -- (Hp,1) matmul would waste 127/128 MXU lanes; do it as an
    # elementwise multiply (VPU) + lane reduction (XLU slot, otherwise idle).
    q = jnp.sum(h2 * w3_ref[0], axis=-1, keepdims=True) + b3_ref[e, 0]
    o_ref[0] = q                              # (tb, 1)


# ---------------------------------------------------------------------------
# Wrappers
# ---------------------------------------------------------------------------
def soft_q_forward_ensemble(state, action, kparams, *, tile_b=512):
    """Fused forward for E stacked critics.  Returns q of shape (E, B, 1)."""
    w1s, w1a, b1, w2, b2, w3r, b3 = kparams
    E, ni, Hp = w1s.shape
    na = w1a.shape[1]
    state = state.astype(jnp.float32)
    action = action.astype(jnp.float32)
    B = state.shape[0]

    tb = B if B <= tile_b else tile_b
    # TODO(synk): pad ragged batches to a multiple of tile_b for huge B.
    assert B % tb == 0, "batch must be a multiple of the batch tile"
    nb = B // tb

    grid_spec = pltpu.PrefetchScalarGridSpec(
        num_scalar_prefetch=0,
        grid=(E, nb),  # critic axis outer -> weights stay resident per critic
        in_specs=[
            pl.BlockSpec((tb, ni), lambda e, i: (i, 0)),        # state tile
            pl.BlockSpec((tb, na), lambda e, i: (i, 0)),        # action tile
            pl.BlockSpec((1, ni, Hp), lambda e, i: (e, 0, 0)),  # W1[:ni]  (bf16)
            pl.BlockSpec((1, na, Hp), lambda e, i: (e, 0, 0)),  # W1[ni:]  (bf16)
            pl.BlockSpec((1, 1, Hp), lambda e, i: (e, 0, 0)),   # b1       (f32)
            pl.BlockSpec((1, Hp, Hp), lambda e, i: (e, 0, 0)),  # W2       (bf16)
            pl.BlockSpec((1, 1, Hp), lambda e, i: (e, 0, 0)),   # b2       (f32)
            pl.BlockSpec((1, 1, Hp), lambda e, i: (e, 0, 0)),   # W3 row   (f32)
            pl.BlockSpec(memory_space=pltpu.MemorySpace.SMEM),  # b3 scalars
        ],
        out_specs=pl.BlockSpec((1, tb, 1), lambda e, i: (e, i, 0)),
    )
    return pl.pallas_call(
        _qnet_kernel,
        out_shape=jax.ShapeDtypeStruct((E, B, 1), jnp.float32),
        grid_spec=grid_spec,
        compiler_params=pltpu.CompilerParams(
            dimension_semantics=("parallel", "parallel")),
    )(state, action, w1s, w1a, b1, w2, b2, w3r, b3)


def soft_q_forward(state, action, kparams):
    """Module-equivalent forward (E == 1): returns q of shape (B, 1)."""
    return soft_q_forward_ensemble(state, action, kparams)[0]


# ---------------------------------------------------------------------------
# Parameter init / packing
# ---------------------------------------------------------------------------
def init_params(key, num_inputs, num_actions, hidden_size, init_w=0.003):
    """Logical f32 params matching nn.Linear defaults (+ linear3 override)."""
    d_in = num_inputs + num_actions
    k1, k2, k3, k4, k5, k6 = jax.random.split(key, 6)

    def uni(k, shape, bound):
        return jax.random.uniform(k, shape, jnp.float32, -bound, bound)

    w1 = uni(k1, (d_in, hidden_size), 1.0 / jnp.sqrt(d_in))
    b1 = uni(k2, (1, hidden_size), 1.0 / jnp.sqrt(d_in))
    w2 = uni(k3, (hidden_size, hidden_size), 1.0 / jnp.sqrt(hidden_size))
    b2 = uni(k4, (1, hidden_size), 1.0 / jnp.sqrt(hidden_size))
    w3 = uni(k5, (hidden_size, 1), init_w)
    b3 = uni(k6, (1, 1), init_w)
    return (w1, b1, w2, b2, w3, b3)


def prepare_params(params_list, num_inputs):
    """One-time packing of E critics' f32 params into the fused-kernel layout:
    split W1 by (state, action) rows, zero-pad hidden to a 128-lane multiple,
    cast matmul weights to bf16, keep biases / W3-row in f32, stack over E."""
    w1_0 = params_list[0][0]
    _, H = w1_0.shape
    Hp = ((H + 127) // 128) * 128
    pad_h = Hp - H

    def pack_one(p):
        w1, b1, w2, b2, w3, b3 = p
        w1p = jnp.pad(w1, ((0, 0), (0, pad_h)))
        w1s = w1p[:num_inputs].astype(jnp.bfloat16)
        w1a = w1p[num_inputs:].astype(jnp.bfloat16)
        b1p = jnp.pad(b1.reshape(1, H), ((0, 0), (0, pad_h))).astype(jnp.float32)
        w2p = jnp.pad(w2, ((0, pad_h), (0, pad_h))).astype(jnp.bfloat16)
        b2p = jnp.pad(b2.reshape(1, H), ((0, 0), (0, pad_h))).astype(jnp.float32)
        w3r = jnp.pad(w3.reshape(1, H), ((0, 0), (0, pad_h))).astype(jnp.float32)
        b3s = b3.reshape(1).astype(jnp.float32)
        return (w1s, w1a, b1p, w2p, b2p, w3r, b3s)

    packed = [pack_one(p) for p in params_list]
    return tuple(jnp.stack([pk[i] for pk in packed], axis=0) for i in range(7))


# ---------------------------------------------------------------------------
# References
# ---------------------------------------------------------------------------
def _reference_f32(state, action, params):
    """Exact PyTorch-module math in f32 (semantics check, loose tolerance)."""
    w1, b1, w2, b2, w3, b3 = params
    x = jnp.concatenate([state, action], axis=1)
    x = jnp.maximum(x @ w1 + b1, 0.0)
    x = jnp.maximum(x @ w2 + b2, 0.0)
    return x @ w3 + b3


def _reference_kernel_precision(state, action, params, num_inputs):
    """Mirrors the kernel's precision policy (bf16 matmul operands, f32
    accumulate + f32 elementwise) for a tight-tolerance comparison."""
    w1, b1, w2, b2, w3, b3 = params
    bf = jnp.bfloat16
    h1 = (jnp.dot(state.astype(bf), w1[:num_inputs].astype(bf),
                  preferred_element_type=jnp.float32)
          + jnp.dot(action.astype(bf), w1[num_inputs:].astype(bf),
                    preferred_element_type=jnp.float32))
    h1 = jnp.maximum(h1 + b1, 0.0)
    h2 = jnp.dot(h1.astype(bf), w2.astype(bf),
                 preferred_element_type=jnp.float32)
    h2 = jnp.maximum(h2 + b2, 0.0)
    return jnp.sum(h2 * w3[:, 0], axis=-1, keepdims=True) + b3


# ---------------------------------------------------------------------------
# Demo / test
# ---------------------------------------------------------------------------
if __name__ == "__main__":
    num_inputs, num_actions, hidden_size, batch = 16, 4, 32, 2

    key = jax.random.PRNGKey(0)
    k_s, k_a, k_p1, k_p2 = jax.random.split(key, 4)
    state = jax.random.normal(k_s, (batch, num_inputs), jnp.float32)
    action = jax.random.normal(k_a, (batch, num_actions), jnp.float32)

    params1 = init_params(k_p1, num_inputs, num_actions, hidden_size)
    params2 = init_params(k_p2, num_inputs, num_actions, hidden_size)

    # Single critic (exactly the PyTorch module's forward).
    kp1 = prepare_params([params1], num_inputs)
    q1 = soft_q_forward(state, action, kp1)
    jax.block_until_ready(q1)
    assert q1.shape == (batch, 1), q1.shape

    # Fused twin SAC critics (Q1, Q2) in ONE pallas_call.
    kp12 = prepare_params([params1, params2], num_inputs)
    q12 = soft_q_forward_ensemble(state, action, kp12)
    jax.block_until_ready(q12)
    assert q12.shape == (2, batch, 1), q12.shape

    # Tight check against a precision-mirrored reference.
    r1 = _reference_kernel_precision(state, action, params1, num_inputs)
    r2 = _reference_kernel_precision(state, action, params2, num_inputs)
    assert jnp.allclose(q1, r1, atol=1e-4, rtol=1e-4), (q1, r1)
    assert jnp.allclose(q12[0], r1, atol=1e-4, rtol=1e-4)
    assert jnp.allclose(q12[1], r2, atol=1e-4, rtol=1e-4)

    # Loose check against exact f32 PyTorch-equivalent math (bf16 matmuls).
    f1 = _reference_f32(state, action, params1)
    assert jnp.allclose(q1, f1, atol=5e-3, rtol=5e-2), (q1, f1)

    print("KERNEL_OK")
</pallas_src>

<mosaic_0001>
module attributes {stable_mosaic.version = 11 : i64} {
  func.func @_qnet_kernel(%arg0: i32, %arg1: i32, %arg2: memref<2x16xf32, #tpu.memory_space<vmem>>, %arg3: memref<2x4xf32, #tpu.memory_space<vmem>>, %arg4: memref<1x16x128xbf16, #tpu.memory_space<vmem>>, %arg5: memref<1x4x128xbf16, #tpu.memory_space<vmem>>, %arg6: memref<1x1x128xf32, #tpu.memory_space<vmem>>, %arg7: memref<1x128x128xbf16, #tpu.memory_space<vmem>>, %arg8: memref<1x1x128xf32, #tpu.memory_space<vmem>>, %arg9: memref<1x1x128xf32, #tpu.memory_space<vmem>>, %arg10: memref<1x1xf32, #tpu.memory_space<smem>>, %arg11: memref<1x2x1xf32, #tpu.memory_space<vmem>>) attributes {dimension_semantics = [#tpu.dimension_semantics<parallel>, #tpu.dimension_semantics<parallel>], iteration_bounds = array<i64: 1, 1>, scalar_prefetch = 0 : i64, scratch_operands = 0 : i64, tpu.core_type = #tpu.core_type<tc>, window_params = [{transform_indices = @transform_0, window_bounds = array<i64: 2, 16>}, {transform_indices = @transform_1, window_bounds = array<i64: 2, 4>}, {transform_indices = @transform_2, window_bounds = array<i64: 1, 16, 128>}, {transform_indices = @transform_3, window_bounds = array<i64: 1, 4, 128>}, {transform_indices = @transform_4, window_bounds = array<i64: 1, 1, 128>}, {transform_indices = @transform_5, window_bounds = array<i64: 1, 128, 128>}, {transform_indices = @transform_6, window_bounds = array<i64: 1, 1, 128>}, {transform_indices = @transform_7, window_bounds = array<i64: 1, 1, 128>}, {transform_indices = @transform_8, window_bounds = array<i64: 1, 1>}, {transform_indices = @transform_9, window_bounds = array<i64: 1, 2, 1>}]} {
    %c0 = arith.constant 0 : index
    %c0_0 = arith.constant 0 : index
    %0 = vector.load %arg2[%c0, %c0_0] : memref<2x16xf32, #tpu.memory_space<vmem>>, vector<2x16xf32>
    %1 = arith.truncf %0 : vector<2x16xf32> to vector<2x16xbf16>
    %c0_1 = arith.constant 0 : index
    %c0_2 = arith.constant 0 : index
    %2 = vector.load %arg3[%c0_1, %c0_2] : memref<2x4xf32, #tpu.memory_space<vmem>>, vector<2x4xf32>
    %3 = arith.truncf %2 : vector<2x4xf32> to vector<2x4xbf16>
    %c0_3 = arith.constant 0 : index
    %c0_4 = arith.constant 0 : index
    %c0_5 = arith.constant 0 : index
    %4 = vector.load %arg4[%c0_3, %c0_4, %c0_5] : memref<1x16x128xbf16, #tpu.memory_space<vmem>>, vector<1x16x128xbf16>
    %5 = vector.shape_cast %4 : vector<1x16x128xbf16> to vector<16x128xbf16>
    %cst = arith.constant dense<0.000000e+00> : vector<2x128xf32>
    %6 = tpu.matmul %1, %5, %cst {dimension_numbers = #tpu.dot_dimension_numbers<[1], [0], [0], [1], [0, 0, 1, 1], [], []>} : vector<2x16xbf16>, vector<16x128xbf16>, vector<2x128xf32> -> vector<2x128xf32>
    %c0_6 = arith.constant 0 : index
    %c0_7 = arith.constant 0 : index
    %c0_8 = arith.constant 0 : index
    %7 = vector.load %arg5[%c0_6, %c0_7, %c0_8] : memref<1x4x128xbf16, #tpu.memory_space<vmem>>, vector<1x4x128xbf16>
    %8 = vector.shape_cast %7 : vector<1x4x128xbf16> to vector<4x128xbf16>
    %cst_9 = arith.constant dense<0.000000e+00> : vector<2x128xf32>
    %9 = tpu.matmul %3, %8, %cst_9 {dimension_numbers = #tpu.dot_dimension_numbers<[1], [0], [0], [1], [0, 0, 1, 1], [], []>} : vector<2x4xbf16>, vector<4x128xbf16>, vector<2x128xf32> -> vector<2x128xf32>
    %10 = arith.addf %6, %9 : vector<2x128xf32>
    %c0_10 = arith.constant 0 : index
    %c0_11 = arith.constant 0 : index
    %c0_12 = arith.constant 0 : index
    %11 = vector.load %arg6[%c0_10, %c0_11, %c0_12] : memref<1x1x128xf32, #tpu.memory_space<vmem>>, vector<1x1x128xf32>
    %12 = vector.shape_cast %11 : vector<1x1x128xf32> to vector<1x128xf32>
    %13 = vector.broadcast %12 : vector<1x128xf32> to vector<2x128xf32>
    %14 = arith.addf %10, %13 : vector<2x128xf32>
    %cst_13 = arith.constant 0.000000e+00 : f32
    %15 = vector.broadcast %cst_13 : f32 to vector<2x128xf32>
    %16 = arith.maximumf %14, %15 : vector<2x128xf32>
    %17 = arith.truncf %16 : vector<2x128xf32> to vector<2x128xbf16>
    %c0_14 = arith.constant 0 : index
    %c0_15 = arith.constant 0 : index
    %c0_16 = arith.constant 0 : index
    %18 = vector.load %arg7[%c0_14, %c0_15, %c0_16] : memref<1x128x128xbf16, #tpu.memory_space<vmem>>, vector<1x128x128xbf16>
    %19 = vector.shape_cast %18 : vector<1x128x128xbf16> to vector<128x128xbf16>
    %cst_17 = arith.constant dense<0.000000e+00> : vector<2x128xf32>
    %20 = tpu.matmul %17, %19, %cst_17 {dimension_numbers = #tpu.dot_dimension_numbers<[1], [0], [0], [1], [0, 0, 1, 1], [], []>} : vector<2x128xbf16>, vector<128x128xbf16>, vector<2x128xf32> -> vector<2x128xf32>
    %c0_18 = arith.constant 0 : index
    %c0_19 = arith.constant 0 : index
    %c0_20 = arith.constant 0 : index
    %21 = vector.load %arg8[%c0_18, %c0_19, %c0_20] : memref<1x1x128xf32, #tpu.memory_space<vmem>>, vector<1x1x128xf32>
    %22 = vector.shape_cast %21 : vector<1x1x128xf32> to vector<1x128xf32>
    %23 = vector.broadcast %22 : vector<1x128xf32> to vector<2x128xf32>
    %24 = arith.addf %20, %23 : vector<2x128xf32>
    %cst_21 = arith.constant 0.000000e+00 : f32
    %25 = vector.broadcast %cst_21 : f32 to vector<2x128xf32>
    %26 = arith.maximumf %24, %25 : vector<2x128xf32>
    %c0_22 = arith.constant 0 : index
    %c0_23 = arith.constant 0 : index
    %c0_24 = arith.constant 0 : index
    %27 = vector.load %arg9[%c0_22, %c0_23, %c0_24] : memref<1x1x128xf32, #tpu.memory_space<vmem>>, vector<1x1x128xf32>
    %28 = vector.shape_cast %27 : vector<1x1x128xf32> to vector<1x128xf32>
    %29 = vector.broadcast %28 : vector<1x128xf32> to vector<2x128xf32>
    %30 = arith.mulf %26, %29 : vector<2x128xf32>
    %cst_25 = arith.constant dense<0.000000e+00> : vector<2xf32>
    %31 = vector.multi_reduction <add>, %30, %cst_25 [1] : vector<2x128xf32> to vector<2xf32>
    %32 = vector.shape_cast %31 : vector<2xf32> to vector<2x1xf32>
    %33 = arith.index_cast %arg0 : i32 to index
    %c0_26 = arith.constant 0 : index
    %34 = memref.load %arg10[%33, %c0_26] : memref<1x1xf32, #tpu.memory_space<smem>>
    %35 = vector.broadcast %34 : f32 to vector<2x1xf32>
    %36 = arith.addf %32, %35 : vector<2x1xf32>
    %c0_27 = arith.constant 0 : index
    %c0_28 = arith.constant 0 : index
    %c0_29 = arith.constant 0 : index
    %37 = vector.load %arg11[%c0_27, %c0_28, %c0_29] : memref<1x2x1xf32, #tpu.memory_space<vmem>>, vector<1x2x1xf32>
    %38 = vector.shape_cast %37 : vector<1x2x1xf32> to vector<2x1xf32>
    %39 = vector.shape_cast %36 : vector<2x1xf32> to vector<1x2x1xf32>
    tpu.vector_store %arg11[%c0_27, %c0_28, %c0_29], %39 {strides = array<i32>} : memref<1x2x1xf32, #tpu.memory_space<vmem>>, vector<1x2x1xf32>,
    return
  }
  func.func @transform_0(%arg0: i32, %arg1: i32) -> (i32, i32) {
    %c0_i32 = arith.constant 0 : i32
    %c0_i32_0 = arith.constant 0 : i32
    return %arg1, %c0_i32 : i32, i32
  }
  func.func @transform_1(%arg0: i32, %arg1: i32) -> (i32, i32) {
    %c0_i32 = arith.constant 0 : i32
    %c0_i32_0 = arith.constant 0 : i32
    return %arg1, %c0_i32 : i32, i32
  }
  func.func @transform_2(%arg0: i32, %arg1: i32) -> (i32, i32, i32) {
    %c0_i32 = arith.constant 0 : i32
    %c0_i32_0 = arith.constant 0 : i32
    %c0_i32_1 = arith.constant 0 : i32
    return %arg0, %c0_i32, %c0_i32_0 : i32, i32, i32
  }
  func.func @transform_3(%arg0: i32, %arg1: i32) -> (i32, i32, i32) {
    %c0_i32 = arith.constant 0 : i32
    %c0_i32_0 = arith.constant 0 : i32
    %c0_i32_1 = arith.constant 0 : i32
    return %arg0, %c0_i32, %c0_i32_0 : i32, i32, i32
  }
  func.func @transform_4(%arg0: i32, %arg1: i32) -> (i32, i32, i32) {
    %c0_i32 = arith.constant 0 : i32
    %c0_i32_0 = arith.constant 0 : i32
    %c0_i32_1 = arith.constant 0 : i32
    return %arg0, %c0_i32, %c0_i32_0 : i32, i32, i32
  }
  func.func @transform_5(%arg0: i32, %arg1: i32) -> (i32, i32, i32) {
    %c0_i32 = arith.constant 0 : i32
    %c0_i32_0 = arith.constant 0 : i32
    %c0_i32_1 = arith.constant 0 : i32
    return %arg0, %c0_i32, %c0_i32_0 : i32, i32, i32
  }
  func.func @transform_6(%arg0: i32, %arg1: i32) -> (i32, i32, i32) {
    %c0_i32 = arith.constant 0 : i32
    %c0_i32_0 = arith.constant 0 : i32
    %c0_i32_1 = arith.constant 0 : i32
    return %arg0, %c0_i32, %c0_i32_0 : i32, i32, i32
  }
  func.func @transform_7(%arg0: i32, %arg1: i32) -> (i32, i32, i32) {
    %c0_i32 = arith.constant 0 : i32
    %c0_i32_0 = arith.constant 0 : i32
    %c0_i32_1 = arith.constant 0 : i32
    return %arg0, %c0_i32, %c0_i32_0 : i32, i32, i32
  }
  func.func @transform_8(%arg0: i32, %arg1: i32) -> (i32, i32) {
    %c0_i32 = arith.constant 0 : i32
    %c0_i32_0 = arith.constant 0 : i32
    %c0_i32_1 = arith.constant 0 : i32
    return %c0_i32, %c0_i32_0 : i32, i32
  }
  func.func @transform_9(%arg0: i32, %arg1: i32) -> (i32, i32, i32) {
    %c0_i32 = arith.constant 0 : i32
    %c0_i32_0 = arith.constant 0 : i32
    return %arg0, %arg1, %c0_i32 : i32, i32, i32
  }
}

</mosaic_0001>

<llo_original>
// kernel: tpu_custom_call.1
$region0: #{tpu_custom_call.1}
  #allocation0 [shape = 'u32[]', space=smem, size = 0x4, offset = 0x4, fixed_abs, tag = 'smem constant byte address 0x4 - core index']
  #allocation1 [shape = 'u32[144,128]{1,0:T(1,128)}', space=vmem, size = 0x12000, scoped, tag = 'internal scratch']
  #allocation2 [shape = 'f32[1,1]{1,0:T(1,128)S(6)}', space=smem, size = 0x200, scoped, tag = 'scoped memory for tpu_custom_call.1']
  %s0 = inlined_call_operand.vmem [shape: f32[2,16], index: 0, kind: input, shape index: {}]
  %s1 = inlined_call_operand.hbm [shape: f32[2,4], index: 1, kind: input, shape index: {}]
  %s2 = inlined_call_operand.hbm [shape: bf16[1,16,128], index: 2, kind: input, shape index: {}]
  %s3 = inlined_call_operand.vmem [shape: bf16[1,4,128], index: 3, kind: input, shape index: {}]
  %s4 = inlined_call_operand.vmem [shape: f32[1,1,128], index: 4, kind: input, shape index: {}]
  %s5 = inlined_call_operand.hbm [shape: bf16[1,128,128], index: 5, kind: input, shape index: {}]
  %s6 = inlined_call_operand.vmem [shape: f32[1,1,128], index: 6, kind: input, shape index: {}]
  %s7 = inlined_call_operand.vmem [shape: f32[1,1,128], index: 7, kind: input, shape index: {}]
  %s8 = inlined_call_operand.<no memory space> [shape: f32[1,1], index: 8, kind: input, shape index: {}]
  %s9 = inlined_call_operand.vmem [shape: f32[1,2,1], index: 9, kind: output, shape index: {}]
  %s10 = sld [smem:[#allocation0]]
  $region58: #{tpu_custom_call.1} parent=0
    _
  %s12 = ssub.s32 1, %s10
  %s13 = scalar_select 0, %s12, %s10
  %14 = sst [smem:[#allocation2]] %s8
  $region1: #{tpu_custom_call.1} parent=0
    #allocation3 [shape = 'u8[1024]{0}', space=vmem, size = 0x400, scoped, tag = 'input window, operand 1, single buffered']
    #allocation4 [shape = 's32[1]{0}', space=sflag, size = 0x4, scoped, tag = 'scoped memory for tpu_custom_call.1']
    #allocation5 [shape = 'u8[4096]{0}', space=vmem, size = 0x1000, scoped, tag = 'input window, operand 2, single buffered']
    #allocation6 [shape = 's32[1]{0}', space=sflag, size = 0x4, scoped, tag = 'scoped memory for tpu_custom_call.1']
    #allocation7 [shape = 'u8[32768]{0}', space=vmem, size = 0x8000, scoped, tag = 'input window, operand 5, single buffered']
    %15 = vsyncpa [#allocation4], 0
    %16 = vsyncpa [#allocation6], 0
    // Predicated region
    $region2: #{tpu_custom_call.1} parent=1 // pred_check
      _
    $region3: #{tpu_custom_call.1} parent=1 // pred_check_branch
      %18 = sbr.rel (0) target = $region5
    $region4: #{tpu_custom_call.1} parent=1 // pred_region
      _
    $region5: #{tpu_custom_call.1} parent=1 // pred_fallthru
      _
    // Predicated region
    $region6: #{tpu_custom_call.1} parent=1 // pred_check
      _
    $region7: #{tpu_custom_call.1} parent=1 // pred_check_branch
      %20 = sbr.rel (0) target = $region9
    $region8: #{tpu_custom_call.1} parent=1 // pred_region
      %s22 = ssub.s32 32, 32
      %23 = vsyncadd [#allocation4], %s22
      %s25 = sshll.u32 [#allocation3], 4
      %s26 = int_to_ptr.vmem [resolvable:$true] %s25
      %28 = dma.hbm_to_vmem [thread:$0]  %s1, 32, %s26, [#allocation4]
    $region9: #{tpu_custom_call.1} parent=1 // pred_fallthru
      _
    // Predicated region
    $region10: #{tpu_custom_call.1} parent=1 // pred_check
      _
    $region11: #{tpu_custom_call.1} parent=1 // pred_check_branch
      %30 = sbr.rel (0) target = $region13
    $region12: #{tpu_custom_call.1} parent=1 // pred_region
      %s32 = ssub.s32 128, 128
      %33 = vsyncadd [#allocation6], %s32
      %s34 = sshll.u32 [#allocation5], 4
      %s35 = int_to_ptr.vmem [resolvable:$true] %s34
      %40 = dma.hbm_to_vmem [thread:$0]  %s2, 128, %s35, [#allocation6], 64, 64, 4
    $region13: #{tpu_custom_call.1} parent=1 // pred_fallthru
      _
    // Predicated region
    $region14: #{tpu_custom_call.1} parent=1 // pred_check
      _
    $region15: #{tpu_custom_call.1} parent=1 // pred_check_branch
      %42 = sbr.rel (0) target = $region17
    $region16: #{tpu_custom_call.1} parent=1 // pred_region
      _
    $region17: #{tpu_custom_call.1} parent=1 // pred_fallthru
      _
    // Predicated region
    $region18: #{tpu_custom_call.1} parent=1 // pred_check
      _
    $region19: #{tpu_custom_call.1} parent=1 // pred_check_branch
      %44 = sbr.rel (0) target = $region21
    $region20: #{tpu_custom_call.1} parent=1 // pred_region
      _
    $region21: #{tpu_custom_call.1} parent=1 // pred_fallthru
      _
    // Predicated region
    $region22: #{tpu_custom_call.1} parent=1 // pred_check
      _
    $region23: #{tpu_custom_call.1} parent=1 // pred_check_branch
      %46 = sbr.rel (0) target = $region25
    $region24: #{tpu_custom_call.1} parent=1 // pred_region
      %s48 = ssub.s32 1024, 1024
      %49 = vsyncadd [#allocation6], %s48
      %s50 = sshll.u32 [#allocation7], 4
      %s51 = int_to_ptr.vmem [resolvable:$true] %s50
      %56 = dma.hbm_to_vmem [thread:$0]  %s5, 1024, %s51, [#allocation6], 64, 64, 4
    $region25: #{tpu_custom_call.1} parent=1 // pred_fallthru
      _
    // Predicated region
    $region26: #{tpu_custom_call.1} parent=1 // pred_check
      _
    $region27: #{tpu_custom_call.1} parent=1 // pred_check_branch
      %58 = sbr.rel (0) target = $region29
    $region28: #{tpu_custom_call.1} parent=1 // pred_region
      _
    $region29: #{tpu_custom_call.1} parent=1 // pred_fallthru
      _
    // Predicated region
    $region30: #{tpu_custom_call.1} parent=1 // pred_check
      _
    $region31: #{tpu_custom_call.1} parent=1 // pred_check_branch
      %60 = sbr.rel (0) target = $region33
    $region32: #{tpu_custom_call.1} parent=1 // pred_region
      _
    $region33: #{tpu_custom_call.1} parent=1 // pred_fallthru
      _
    // Predicated region
    $region34: #{tpu_custom_call.1} parent=1 // pred_check
      _
    $region35: #{tpu_custom_call.1} parent=1 // pred_check_branch
      %62 = sbr.rel (0) target = $region37
    $region36: #{tpu_custom_call.1} parent=1 // pred_region
      _
    $region37: #{tpu_custom_call.1} parent=1 // pred_fallthru
      _
    // Predicated region
    $region38: #{tpu_custom_call.1} parent=1 // pred_check
      _
    $region39: #{tpu_custom_call.1} parent=1 // pred_check_branch
      %64 = sbr.rel (0) target = $region41
    $region40: #{tpu_custom_call.1} parent=1 // pred_region
      %65 = dma.done [#allocation4], 32
    $region41: #{tpu_custom_call.1} parent=1 // pred_fallthru
      _
    // Predicated region
    $region42: #{tpu_custom_call.1} parent=1 // pred_check
      _
    $region43: #{tpu_custom_call.1} parent=1 // pred_check_branch
      %67 = sbr.rel (0) target = $region45
    $region44: #{tpu_custom_call.1} parent=1 // pred_region
      %68 = dma.done [#allocation6], 128
    $region45: #{tpu_custom_call.1} parent=1 // pred_fallthru
      _
    // Predicated region
    $region46: #{tpu_custom_call.1} parent=1 // pred_check
      _
    $region47: #{tpu_custom_call.1} parent=1 // pred_check_branch
      %70 = sbr.rel (0) target = $region49
    $region48: #{tpu_custom_call.1} parent=1 // pred_region
      %71 = dma.done [#allocation6], 1024
    $region49: #{tpu_custom_call.1} parent=1 // pred_fallthru
      _
    %v73 = vld [vmem:[%s0] sm:$0x3]
    %v74 = vpack.c.bf16 %v73, %v73
    %v75 = vld [vmem:[#allocation3] sm:$0x3]
    %v76 = vpack.c.bf16 %v75, %v75
    %v77 = vld [vmem:[#allocation5] sm:$0xf]
    %v78 = vld [vmem:[#allocation5 + $0x4] sm:$0xf]
    %v79 = vld [vmem:[%s3] sm:$0x3]
    %vm80 = vcmask 31744
    %v82 = vsel %vm80, %v76, 0
    %vm84 = vcmask 1041408
    %v86 = vsel %vm84, %v79, 0
    %88 = vmatprep.subr.bf16.mxu0 0
    %89 = vmatpush1.bf16.msra.mxu0 0
    %90 = vmatprep.subr.bf16.mxu0 0
    %91 = vmatpush1.bf16.msra.mxu0 0
    %92 = vmatprep.subr.bf16.mxu0 0
    %93 = vmatpush1.bf16.msra.mxu0 0
    %94 = vmatprep.subr.bf16.mxu0 0
    %95 = vmatpush1.bf16.msra.mxu0 0
    %96 = vmatprep.subr.bf16.mxu0 0
    %97 = vmatpush1.bf16.msra.mxu0 0
    %98 = vmatprep.subr.bf16.mxu0 0
    %99 = vmatpush1.bf16.msra.mxu0 0
    %100 = vmatprep.subr.bf16.mxu0 0
    %101 = vmatpush1.bf16.msra.mxu0 0
    %102 = vmatprep.subr.bf16.mxu0 0
    %103 = vmatpush1.bf16.msra.mxu0 %v86
    %104 = vmatprep.subr.bf16.mxu0 0
    %105 = vmatpush2.bf16.msra.mxu0 0
    %106 = vmatprep.subr.bf16.mxu0 0
    %107 = vmatpush2.bf16.msra.mxu0 0
    %108 = vmatprep.subr.bf16.mxu0 0
    %109 = vmatpush2.bf16.msra.mxu0 0
    %110 = vmatprep.subr.bf16.mxu0 0
    %111 = vmatpush2.bf16.msra.mxu0 0
    %112 = vmatprep.subr.bf16.mxu0 0
    %113 = vmatpush2.bf16.msra.mxu0 0
    %114 = vmatprep.subr.bf16.mxu0 0
    %115 = vmatpush2.bf16.msra.mxu0 0
    %116 = vmatprep.subr.bf16.mxu0 0
    %117 = vmatpush2.bf16.msra.mxu0 0
    %118 = vmatprep.subr.bf16.mxu0 0
    %119 = vmatpush2.bf16.msra.mxu0 0
    %120 = vmatprep.mubr.bf16.mxu0 0
    %121 = vmatmul.mubr.bf16.gmra.mxu0 %v82
    %v122 = vpop.f32.mrf.mxu0
    %v123 = vadd.f32 0.0, %v122
    %v124 = vpop.f32.mrf.mxu0
    %v125 = vpop.f32.mrf.mxu0
    %v126 = vpop.f32.mrf.mxu0
    %127 = vdwg.mxu0
    %v130 = vunpack.c.l.b16 %v77
    %v131 = vunpack.c.l.b16 %v78
    %v132 = vpack.c.b16 %v131, %v130
    %vm134 = vcmask 130048
    %v136 = vsel %vm134, %v74, 0
    %138 = vmatprep.subr.bf16.mxu0 0
    %139 = vmatpush1.bf16.msra.mxu0 0
    %140 = vmatprep.subr.bf16.mxu0 0
    %141 = vmatpush1.bf16.msra.mxu0 0
    %142 = vmatprep.subr.bf16.mxu0 0
    %143 = vmatpush1.bf16.msra.mxu0 0
    %144 = vmatprep.subr.bf16.mxu0 0
    %145 = vmatpush1.bf16.msra.mxu0 0
    %146 = vmatprep.subr.bf16.mxu0 0
    %147 = vmatpush1.bf16.msra.mxu0 0
    %148 = vmatprep.subr.bf16.mxu0 0
    %149 = vmatpush1.bf16.msra.mxu0 0
    %150 = vmatprep.subr.bf16.mxu0 0
    %151 = vmatpush1.bf16.msra.mxu0 0
    %152 = vmatprep.subr.bf16.mxu0 0
    %153 = vmatpush1.bf16.msra.mxu0 %v132
    %154 = vmatprep.subr.bf16.mxu0 0
    %155 = vmatpush2.bf16.msra.mxu0 0
    %156 = vmatprep.subr.bf16.mxu0 0
    %157 = vmatpush2.bf16.msra.mxu0 0
    %158 = vmatprep.subr.bf16.mxu0 0
    %159 = vmatpush2.bf16.msra.mxu0 0
    %160 = vmatprep.subr.bf16.mxu0 0
    %161 = vmatpush2.bf16.msra.mxu0 0
    %162 = vmatprep.subr.bf16.mxu0 0
    %163 = vmatpush2.bf16.msra.mxu0 0
    %164 = vmatprep.subr.bf16.mxu0 0
    %165 = vmatpush2.bf16.msra.mxu0 0
    %166 = vmatprep.subr.bf16.mxu0 0
    %167 = vmatpush2.bf16.msra.mxu0 0
    %168 = vmatprep.subr.bf16.mxu0 0
    %169 = vmatpush2.bf16.msra.mxu0 0
    %170 = vmatprep.mubr.bf16.mxu0 0
    %171 = vmatmul.mubr.bf16.gmra.mxu0 %v136
    %v172 = vpop.f32.mrf.mxu0
    %v173 = vadd.f32 %v123, %v172
    %v174 = vpop.f32.mrf.mxu0
    %v175 = vpop.f32.mrf.mxu0
    %v176 = vpop.f32.mrf.mxu0
    %177 = vdwg.mxu0
    %v178 = vld [vmem:[%s4] sm:$0x1]
    %v180 = vlaneseq
    %v181 = vshrl.u32 %v180, 7
    %v182 = vsub.s32 0, %v181
    %v183 = vrot.slane %v178, %v182
    %v185 = vadd.f32 %v173, %v183
    %v186 = vmax.f32 %v185, 0.0
    %v187 = vpack.c.bf16 %v186, %v186
    %v188 = vld [vmem:[#allocation7] sm:$0xf]
    %v189 = vld [vmem:[#allocation7 + $0x4] sm:$0xf]
    %v190 = vld [vmem:[#allocation7 + $0x8] sm:$0xf]
    %v191 = vld [vmem:[#allocation7 + $0xc] sm:$0xf]
    %v192 = vld [vmem:[#allocation7 + $0x10] sm:$0xf]
    %v193 = vld [vmem:[#allocation7 + $0x14] sm:$0xf]
    %v194 = vld [vmem:[#allocation7 + $0x18] sm:$0xf]
    %v195 = vld [vmem:[#allocation7 + $0x1c] sm:$0xf]
    %v196 = vld [vmem:[#allocation7 + $0x20] sm:$0xf]
    %v197 = vld [vmem:[#allocation7 + $0x24] sm:$0xf]
    %v198 = vld [vmem:[#allocation7 + $0x28] sm:$0xf]
    %v199 = vld [vmem:[#allocation7 + $0x2c] sm:$0xf]
    %v200 = vld [vmem:[#allocation7 + $0x30] sm:$0xf]
    %v201 = vld [vmem:[#allocation7 + $0x34] sm:$0xf]
    %v202 = vld [vmem:[#allocation7 + $0x38] sm:$0xf]
    %v203 = vld [vmem:[#allocation7 + $0x3c] sm:$0xf]
    %v204 = vld [vmem:[%s6] sm:$0x1]
    %v206 = vlaneseq
    %v207 = vshrl.u32 %v206, 7
    %v208 = vsub.s32 0, %v207
    %v209 = vrot.slane %v204, %v208
    %v227 = vunpack.c.l.b16 %v188
    %v228 = vunpack.c.l.b16 %v189
    %v229 = vunpack.c.l.b16 %v190
    %v230 = vunpack.c.l.b16 %v191
    %v231 = vunpack.c.l.b16 %v192
    %v232 = vunpack.c.l.b16 %v193
    %v233 = vunpack.c.l.b16 %v194
    %v234 = vunpack.c.l.b16 %v195
    %v235 = vunpack.c.l.b16 %v196
    %v236 = vunpack.c.l.b16 %v197
    %v237 = vunpack.c.l.b16 %v198
    %v238 = vunpack.c.l.b16 %v199
    %v239 = vunpack.c.l.b16 %v200
    %v240 = vunpack.c.l.b16 %v201
    %v241 = vunpack.c.l.b16 %v202
    %v242 = vunpack.c.l.b16 %v203
    %v243 = vpack.c.b16 %v228, %v227
    %v244 = vpack.c.b16 %v230, %v229
    %v245 = vpack.c.b16 %v232, %v231
    %v246 = vpack.c.b16 %v234, %v233
    %v247 = vpack.c.b16 %v236, %v235
    %v248 = vpack.c.b16 %v238, %v237
    %v249 = vpack.c.b16 %v240, %v239
    %v250 = vpack.c.b16 %v242, %v241
    %259 = vmatprep.subr.bf16.mxu0 0
    %260 = vmatpush1.bf16.msra.mxu0 %v250
    %261 = vmatprep.subr.bf16.mxu0 0
    %262 = vmatpush1.bf16.msra.mxu0 %v249
    %263 = vmatprep.subr.bf16.mxu0 0
    %264 = vmatpush1.bf16.msra.mxu0 %v248
    %265 = vmatprep.subr.bf16.mxu0 0
    %266 = vmatpush1.bf16.msra.mxu0 %v247
    %267 = vmatprep.subr.bf16.mxu0 0
    %268 = vmatpush1.bf16.msra.mxu0 %v246
    %269 = vmatprep.subr.bf16.mxu0 0
    %270 = vmatpush1.bf16.msra.mxu0 %v245
    %271 = vmatprep.subr.bf16.mxu0 0
    %272 = vmatpush1.bf16.msra.mxu0 %v244
    %273 = vmatprep.subr.bf16.mxu0 0
    %274 = vmatpush1.bf16.msra.mxu0 %v243
    %275 = vmatprep.subr.bf16.mxu0 0
    %276 = vmatpush2.bf16.msra.mxu0 0
    %277 = vmatprep.subr.bf16.mxu0 0
    %278 = vmatpush2.bf16.msra.mxu0 0
    %279 = vmatprep.subr.bf16.mxu0 0
    %280 = vmatpush2.bf16.msra.mxu0 0
    %281 = vmatprep.subr.bf16.mxu0 0
    %282 = vmatpush2.bf16.msra.mxu0 0
    %283 = vmatprep.subr.bf16.mxu0 0
    %284 = vmatpush2.bf16.msra.mxu0 0
    %285 = vmatprep.subr.bf16.mxu0 0
    %286 = vmatpush2.bf16.msra.mxu0 0
    %287 = vmatprep.subr.bf16.mxu0 0
    %288 = vmatpush2.bf16.msra.mxu0 0
    %289 = vmatprep.subr.bf16.mxu0 0
    %290 = vmatpush2.bf16.msra.mxu0 0
    %291 = vmatprep.mubr.bf16.mxu0 0
    %292 = vmatmul.mubr.bf16.gmra.mxu0 %v187
    %v293 = vpop.f32.mrf.mxu0
    %v294 = vadd.f32 %v209, %v293
    %v295 = vpop.f32.mrf.mxu0
    %v296 = vpop.f32.mrf.mxu0
    %v297 = vpop.f32.mrf.mxu0
    %298 = vdwg.mxu0
    %v299 = vmax.f32 %v294, 0.0
    %v300 = vld [vmem:[%s7] sm:$0x1]
    %v302 = vlaneseq
    %v303 = vshrl.u32 %v302, 7
    %v304 = vsub.s32 0, %v303
    %v305 = vrot.slane %v300, %v304
    %v307 = vmul.f32 %v299, %v305
    %v308 = vsel %vm84, %v307, 0.0
    %309 = vadd.xlane.f32.xlu0 %v308
    %v310 = vpop.xlane.xlu0 %309
    %s311 = smul.u32 0, 128
    %s312 = sld [smem:[#allocation2 + %s311]]
    %v313 = vstv %s312
    %v314 = vadd.f32 %v310, %v313
    %vm315 = vcmask 1024
    %316 = vst.msk [vmem:[%s9] sm:$0x3] %vm315, %v314
    // Predicated region
    $region50: #{tpu_custom_call.1} parent=1 // pred_check
      _
    $region51: #{tpu_custom_call.1} parent=1 // pred_check_branch
      %318 = sbr.rel (0) target = $region53
    $region52: #{tpu_custom_call.1} parent=1 // pred_region
      _
    $region53: #{tpu_custom_call.1} parent=1 // pred_fallthru
      _
    // Predicated region
    $region54: #{tpu_custom_call.1} parent=1 // pred_check
      _
    $region55: #{tpu_custom_call.1} parent=1 // pred_check_branch
      %320 = sbr.rel (0) target = $region57
    $region56: #{tpu_custom_call.1} parent=1 // pred_region
      _
    $region57: #{tpu_custom_call.1} parent=1 // pred_fallthru
      _
    %321 = vsyncpa [#allocation4], 1
    %322 = vsyncpa [#allocation6], 1

</llo_original>
